<compile_context>
chip_gen: v7x
topology: tpu7x:2x2x1
jax: 0.10.0
libtpu: 0.0.40
codegen_flags: <defaults>
</compile_context>

<pallas_src>
import functools

import jax
import jax.numpy as jnp
from jax import lax
from jax.experimental import pallas as pl
from jax.experimental.pallas import tpu as pltpu

ALPHA = 0.05
LANES = 128
SUBLANES = 8
CHUNK_ROWS = 256            # strip-mine unit inside a tile (multiple of 16)
DEFAULT_TILE_ROWS = 2048    # 2048x128 f32 = 1 MiB per input per pipeline buffer


def _round_up(x, m):
    return ((x + m - 1) // m) * m


def _chunk_loss(x, y, inv_alpha):
    """Per-element BCEBlur loss for one f32 chunk (no reduction)."""
    e = jnp.exp(-jnp.abs(x))                              # EUP exp #1 (reused)
    denom = 1.0 + e
    # Numerically stable BCEWithLogitsLoss(reduction='none'):
    #   loss = max(x, 0) - x*y + log(1 + exp(-|x|))
    loss = jnp.maximum(x, 0.0) - x * y + jnp.log(denom)   # EUP log (reuses denom)
    # sigmoid(x) from the same e: 1/(1+e) for x>=0 else e/(1+e).
    r = pl.reciprocal(denom, approx=True)                 # EUP approx recip
    r = r * (2.0 - denom * r)                             # 1 Newton step (VPU) -> ~f32 exact
    p = jnp.where(x >= 0.0, r, e * r)
    # Blur modulation; inv_alpha is a hoisted Python float (no per-elem divide).
    return loss * (1.0 - jnp.exp((p - y - 1.0) * inv_alpha))   # EUP exp #2


def _tile_partial_sum(pred_ref, true_ref, *, tile_rows, chunk_rows, inv_alpha,
                      row_limit):
    """Reduce the current (tile_rows, 128) tile to an (8, 128) partial sum.

    Strip-mined over chunk_rows-row chunks (unrolled) so intermediates stay a
    few vregs / small VMEM temporaries. row_limit (static int or None) masks
    rows >= row_limit (garbage rows of a partially out-of-bounds block) with a
    select, so NaN/Inf garbage is dropped, never multiplied.
    """
    n_chunks = tile_rows // chunk_rows

    def body(ci, acc):
        start = pl.multiple_of(ci * chunk_rows, chunk_rows)
        x = pred_ref[pl.ds(start, chunk_rows), :].astype(jnp.float32)
        y = true_ref[pl.ds(start, chunk_rows), :].astype(jnp.float32)
        loss = _chunk_loss(x, y, inv_alpha)
        if row_limit is not None:
            rid = start + lax.broadcasted_iota(jnp.int32, (chunk_rows, LANES), 0)
            loss = jnp.where(rid < row_limit, loss, 0.0)
        # Sum groups of 8 rows (pure vreg-wise VPU adds) into (8,128).
        return acc + jnp.sum(loss.reshape(-1, SUBLANES, LANES), axis=0)

    return lax.fori_loop(0, n_chunks, body,
                         jnp.zeros((SUBLANES, LANES), jnp.float32),
                         unroll=True)


def _bce_blur_kernel(pred_ref, true_ref, out_ref, *, inv_alpha, tile_rows,
                     chunk_rows, rows, total_tiles, tiles_per_split,
                     has_overhang):
    c = pl.program_id(0)              # TensorCore split ("parallel")
    i = pl.program_id(1)              # tile within split ("arbitrary"/reduction)
    t = c * tiles_per_split + i       # linear tile index

    # Resident-accumulator init: output block index is constant across i.
    @pl.when(i == 0)
    def _init():
        out_ref[...] = jnp.zeros_like(out_ref)

    def _full():
        out_ref[...] += _tile_partial_sum(
            pred_ref, true_ref, tile_rows=tile_rows, chunk_rows=chunk_rows,
            inv_alpha=inv_alpha, row_limit=None)

    last_rows = rows - (total_tiles - 1) * tile_rows      # static int
    ragged = last_rows != tile_rows                       # static bool

    def _masked():
        out_ref[...] += _tile_partial_sum(
            pred_ref, true_ref, tile_rows=tile_rows, chunk_rows=chunk_rows,
            inv_alpha=inv_alpha, row_limit=last_rows)

    if not ragged and not has_overhang:
        # No ragged tail and an even split: no masking/skip code emitted at all.
        _full()
    else:
        is_last_real = t == total_tiles - 1
        valid = (t < total_tiles) if has_overhang else None
        if ragged:
            full_cond = jnp.logical_not(is_last_real)
            last_cond = is_last_real
            if has_overhang:
                full_cond = jnp.logical_and(valid, full_cond)
                last_cond = jnp.logical_and(valid, last_cond)
            pl.when(full_cond)(_full)
            pl.when(last_cond)(_masked)
        else:
            # Even tiles, odd split: only skip the duplicated overhang step.
            pl.when(valid)(_full)


def _loss_sum_jnp_f32(x, y, alpha):
    """Tiny reference-style sum (used only for the <128-element tail)."""
    x = x.astype(jnp.float32)
    y = y.astype(jnp.float32)
    loss = jnp.maximum(x, 0.0) - x * y + jnp.log1p(jnp.exp(-jnp.abs(x)))
    p = jax.nn.sigmoid(x)
    return jnp.sum(loss * (1.0 - jnp.exp((p - y - 1.0) / (alpha + 1e-4))))


def bce_blur_with_logits_loss(pred, true, alpha=ALPHA, *,
                              tile_rows=DEFAULT_TILE_ROWS):
    """Mean of BCE-with-logits loss modulated by the blur alpha factor."""
    assert pred.shape == true.shape
    n = pred.size
    inv_alpha = 1.0 / (alpha + 1e-4)

    def _prep(x):
        x = x.reshape(-1)                               # metadata-only
        if not jnp.issubdtype(x.dtype, jnp.floating):
            x = x.astype(jnp.float32)                   # bool/int targets only
        return x                                        # f32/bf16/f16 stream raw

    pred_flat = _prep(pred)
    true_flat = _prep(true)

    tail = n % LANES
    n_main = n - tail
    rows = n_main // LANES

    # <128-element tail handled outside the kernel (no full-tensor jnp.pad copy).
    tail_sum = (_loss_sum_jnp_f32(pred_flat[n_main:], true_flat[n_main:], alpha)
                if tail else jnp.float32(0.0))

    if rows == 0:
        return (tail_sum / n).astype(jnp.float32)

    pred2d = (pred_flat[:n_main] if tail else pred_flat).reshape(rows, LANES)
    true2d = (true_flat[:n_main] if tail else true_flat).reshape(rows, LANES)

    # Tile rows: multiple of CHUNK_ROWS for large inputs, else a multiple of 16
    # (valid sublane tiling for both f32 and bf16/f16).
    if rows >= CHUNK_ROWS:
        tr = _round_up(min(tile_rows, _round_up(rows, CHUNK_ROWS)), CHUNK_ROWS)
        chunk = CHUNK_ROWS
    else:
        tr = _round_up(rows, 16)
        chunk = tr

    total_tiles = pl.cdiv(rows, tr)
    # v7x: shard tiles over both TensorCores whenever there are >= 2 tiles.
    num_splits = 2 if total_tiles >= 2 else 1
    tiles_per_split = pl.cdiv(total_tiles, num_splits)
    has_overhang = num_splits * tiles_per_split != total_tiles

    def in_index_map(c, i):
        t = c * tiles_per_split + i
        if has_overhang:
            # Overhang step of the short split re-maps to the last real block;
            # the kernel skips its accumulation with pl.when.
            t = jnp.minimum(t, total_tiles - 1)
        return (t, 0)

    kernel = functools.partial(
        _bce_blur_kernel,
        inv_alpha=inv_alpha, tile_rows=tr, chunk_rows=chunk, rows=rows,
        total_tiles=total_tiles, tiles_per_split=tiles_per_split,
        has_overhang=has_overhang)

    item_bytes = pred2d.dtype.itemsize + true2d.dtype.itemsize
    cost = pl.CostEstimate(
        flops=20 * n_main,
        transcendentals=4 * n_main,
        bytes_accessed=n_main * item_bytes + num_splits * SUBLANES * LANES * 4)

    # 2 double-buffered inputs + chunk-sized intermediates + output + headroom.
    tile_in_bytes = tr * LANES * item_bytes
    vmem_limit = min(2 * tile_in_bytes + (16 << 20), 48 << 20)

    partials = pl.pallas_call(
        kernel,
        out_shape=jax.ShapeDtypeStruct((num_splits * SUBLANES, LANES),
                                       jnp.float32),
        grid_spec=pltpu.PrefetchScalarGridSpec(
            num_scalar_prefetch=0,
            grid=(num_splits, tiles_per_split),
            in_specs=[pl.BlockSpec((tr, LANES), in_index_map),
                      pl.BlockSpec((tr, LANES), in_index_map)],
            out_specs=pl.BlockSpec((SUBLANES, LANES), lambda c, i: (c, 0)),
        ),
        compiler_params=pltpu.CompilerParams(
            dimension_semantics=("parallel", "arbitrary"),
            vmem_limit_bytes=vmem_limit),
        cost_estimate=cost,
    )(pred2d, true2d)

    # Final cross-lane reduction + mean (tiny, done once outside the kernel).
    return ((jnp.sum(partials) + tail_sum) / n).astype(jnp.float32)


def _reference(pred, true, alpha=ALPHA):
    x = pred.astype(jnp.float32)
    y = true.astype(jnp.float32)
    loss = jnp.maximum(x, 0.0) - x * y + jnp.log1p(jnp.exp(-jnp.abs(x)))
    p = jax.nn.sigmoid(x)
    alpha_factor = 1.0 - jnp.exp((p - y - 1.0) / (alpha + 1e-4))
    return jnp.mean(loss * alpha_factor)


if __name__ == "__main__":
    key = jax.random.PRNGKey(0)
    k1, k2 = jax.random.split(key)
    # NCHW logits and binary targets, matching nn.BCEWithLogitsLoss usage.
    pred = jax.random.normal(k1, (2, 4, 16, 16), dtype=jnp.float32)
    true = (jax.random.uniform(k2, (2, 4, 16, 16)) > 0.5).astype(jnp.float32)

    out = bce_blur_with_logits_loss(pred, true)
    out = jax.block_until_ready(out)

    ref = _reference(pred, true)
    # Tolerance accounts for the Newton-refined approx reciprocal in the
    # in-kernel sigmoid; observed error is far below this bound.
    assert jnp.allclose(out, ref, rtol=1e-4, atol=1e-4), (out, ref)
    print("KERNEL_OK")
</pallas_src>

<mosaic_0001>
module attributes {stable_mosaic.version = 11 : i64} {
  func.func @_bce_blur_kernel(%arg0: i32, %arg1: i32, %arg2: memref<16x128xf32, #tpu.memory_space<vmem>>, %arg3: memref<16x128xf32, #tpu.memory_space<vmem>>, %arg4: memref<8x128xf32, #tpu.memory_space<vmem>>) attributes {dimension_semantics = [#tpu.dimension_semantics<parallel>, #tpu.dimension_semantics<arbitrary>], iteration_bounds = array<i64: 1, 1>, scalar_prefetch = 0 : i64, scratch_operands = 0 : i64, tpu.core_type = #tpu.core_type<tc>, window_params = [{transform_indices = @transform_0, window_bounds = array<i64: 16, 128>}, {transform_indices = @transform_1, window_bounds = array<i64: 16, 128>}, {transform_indices = @transform_2, window_bounds = array<i64: 8, 128>}]} {
    %c0_i32 = arith.constant 0 : i32
    %0 = arith.cmpi eq, %arg1, %c0_i32 : i32
    %1 = arith.extui %0 : i1 to i32
    %c0_i32_0 = arith.constant 0 : i32
    %2 = arith.cmpi ne, %1, %c0_i32_0 : i32
    scf.if %2 {
      %cst_16 = arith.constant 0.000000e+00 : f32
      %46 = vector.broadcast %cst_16 : f32 to vector<8x128xf32>
      %c0_17 = arith.constant 0 : index
      %c0_18 = arith.constant 0 : index
      %47 = vector.load %arg4[%c0_17, %c0_18] : memref<8x128xf32, #tpu.memory_space<vmem>>, vector<8x128xf32>
      tpu.vector_store %arg4[%c0_17, %c0_18], %46 {strides = array<i32>} : memref<8x128xf32, #tpu.memory_space<vmem>>, vector<8x128xf32>,
    } else {
    }
    %c0 = arith.constant 0 : index
    %c0_1 = arith.constant 0 : index
    %3 = vector.load %arg4[%c0, %c0_1] : memref<8x128xf32, #tpu.memory_space<vmem>>, vector<8x128xf32>
    %cst = arith.constant 0.000000e+00 : f32
    %4 = vector.broadcast %cst : f32 to vector<8x128xf32>
    %c0_i32_2 = arith.constant 0 : i32
    %c16_i32 = arith.constant 16 : i32
    %5 = arith.muli %c0_i32_2, %c16_i32 : i32
    %6 = tpu.assume_multiple %5, 16 : i32
    %7 = arith.index_cast %6 : i32 to index
    %c0_3 = arith.constant 0 : index
    %8 = vector.load %arg2[%7, %c0_3] : memref<16x128xf32, #tpu.memory_space<vmem>>, vector<16x128xf32>
    %9 = arith.index_cast %6 : i32 to index
    %c0_4 = arith.constant 0 : index
    %10 = vector.load %arg3[%9, %c0_4] : memref<16x128xf32, #tpu.memory_space<vmem>>, vector<16x128xf32>
    %11 = math.absf %8 : vector<16x128xf32>
    %cst_5 = arith.constant 0.000000e+00 : f32
    %12 = vector.broadcast %cst_5 : f32 to vector<16x128xf32>
    %13 = arith.subf %12, %11 : vector<16x128xf32>
    %14 = math.exp %13 : vector<16x128xf32>
    %cst_6 = arith.constant 1.000000e+00 : f32
    %15 = vector.broadcast %cst_6 : f32 to vector<16x128xf32>
    %16 = arith.addf %15, %14 : vector<16x128xf32>
    %cst_7 = arith.constant 0.000000e+00 : f32
    %17 = vector.broadcast %cst_7 : f32 to vector<16x128xf32>
    %18 = arith.maximumf %8, %17 : vector<16x128xf32>
    %19 = arith.mulf %8, %10 : vector<16x128xf32>
    %20 = arith.subf %18, %19 : vector<16x128xf32>
    %21 = math.log %16 : vector<16x128xf32>
    %22 = arith.addf %20, %21 : vector<16x128xf32>
    %23 = tpu.reciprocal %16 {approx = true} : vector<16x128xf32> -> vector<16x128xf32>
    %24 = arith.mulf %16, %23 : vector<16x128xf32>
    %cst_8 = arith.constant 2.000000e+00 : f32
    %25 = vector.broadcast %cst_8 : f32 to vector<16x128xf32>
    %26 = arith.subf %25, %24 : vector<16x128xf32>
    %27 = arith.mulf %23, %26 : vector<16x128xf32>
    %cst_9 = arith.constant 0.000000e+00 : f32
    %28 = vector.broadcast %cst_9 : f32 to vector<16x128xf32>
    %29 = arith.cmpf oge, %8, %28 : vector<16x128xf32>
    %30 = arith.mulf %14, %27 : vector<16x128xf32>
    %31 = arith.select %29, %27, %30 : vector<16x128xi1>, vector<16x128xf32>
    %32 = arith.subf %31, %10 : vector<16x128xf32>
    %cst_10 = arith.constant 1.000000e+00 : f32
    %33 = vector.broadcast %cst_10 : f32 to vector<16x128xf32>
    %34 = arith.subf %32, %33 : vector<16x128xf32>
    %cst_11 = arith.constant 19.9600792 : f32
    %35 = vector.broadcast %cst_11 : f32 to vector<16x128xf32>
    %36 = arith.mulf %34, %35 : vector<16x128xf32>
    %37 = math.exp %36 : vector<16x128xf32>
    %cst_12 = arith.constant 1.000000e+00 : f32
    %38 = vector.broadcast %cst_12 : f32 to vector<16x128xf32>
    %39 = arith.subf %38, %37 : vector<16x128xf32>
    %40 = arith.mulf %22, %39 : vector<16x128xf32>
    %41 = vector.shape_cast %40 : vector<16x128xf32> to vector<2x8x128xf32>
    %cst_13 = arith.constant dense<0.000000e+00> : vector<8x128xf32>
    %42 = vector.multi_reduction <add>, %41, %cst_13 [0] : vector<2x8x128xf32> to vector<8x128xf32>
    %43 = arith.addf %4, %42 : vector<8x128xf32>
    %c1_i32 = arith.constant 1 : i32
    %44 = arith.addf %3, %43 : vector<8x128xf32>
    %c0_14 = arith.constant 0 : index
    %c0_15 = arith.constant 0 : index
    %45 = vector.load %arg4[%c0_14, %c0_15] : memref<8x128xf32, #tpu.memory_space<vmem>>, vector<8x128xf32>
    tpu.vector_store %arg4[%c0_14, %c0_15], %44 {strides = array<i32>} : memref<8x128xf32, #tpu.memory_space<vmem>>, vector<8x128xf32>,
    return
  }
  func.func @transform_0(%arg0: i32, %arg1: i32) -> (i32, i32) {
    %c1_i32 = arith.constant 1 : i32
    %0 = arith.muli %arg0, %c1_i32 : i32
    %1 = arith.addi %0, %arg1 : i32
    %c0_i32 = arith.constant 0 : i32
    %c0_i32_0 = arith.constant 0 : i32
    return %1, %c0_i32 : i32, i32
  }
  func.func @transform_1(%arg0: i32, %arg1: i32) -> (i32, i32) {
    %c1_i32 = arith.constant 1 : i32
    %0 = arith.muli %arg0, %c1_i32 : i32
    %1 = arith.addi %0, %arg1 : i32
    %c0_i32 = arith.constant 0 : i32
    %c0_i32_0 = arith.constant 0 : i32
    return %1, %c0_i32 : i32, i32
  }
  func.func @transform_2(%arg0: i32, %arg1: i32) -> (i32, i32) {
    %c0_i32 = arith.constant 0 : i32
    %c0_i32_0 = arith.constant 0 : i32
    return %arg0, %c0_i32 : i32, i32
  }
}

</mosaic_0001>

<llo_original>
// kernel: tpu_custom_call.1
$region0: #{tpu_custom_call.1}
  #allocation0 [shape = 'u32[]', space=smem, size = 0x4, offset = 0x4, fixed_abs, tag = 'smem constant byte address 0x4 - core index']
  #allocation1 [shape = 'u32[144,128]{1,0:T(1,128)}', space=vmem, size = 0x12000, scoped, tag = 'internal scratch']
  %s0 = inlined_call_operand.hbm [shape: f32[16,128], index: 0, kind: input, shape index: {}]
  %s1 = inlined_call_operand.hbm [shape: f32[16,128], index: 1, kind: input, shape index: {}]
  %s2 = inlined_call_operand.hbm [shape: f32[8,128], index: 2, kind: output, shape index: {}]
  %s3 = sld [smem:[#allocation0]]
  $region30: #{tpu_custom_call.1} parent=0
    _
  %s5 = ssub.s32 1, %s3
  %s6 = scalar_select 0, %s5, %s3
  $region1: #{tpu_custom_call.1} parent=0
    #allocation2 [shape = 'u8[8192]{0}', space=vmem, size = 0x2000, scoped, tag = 'input window, operand 0, single buffered']
    #allocation3 [shape = 's32[1]{0}', space=sflag, size = 0x4, scoped, tag = 'scoped memory for tpu_custom_call.1']
    #allocation4 [shape = 's32[1]{0}', space=sflag, size = 0x4, scoped, tag = 'scoped memory for tpu_custom_call.1']
    #allocation5 [shape = 'u8[8192]{0}', space=vmem, size = 0x2000, scoped, tag = 'input window, operand 1, single buffered']
    #allocation6 [shape = 's32[1]{0}', space=sflag, size = 0x4, scoped, tag = 'scoped memory for tpu_custom_call.1']
    #allocation7 [shape = 'u8[4096]{0}', space=vmem, size = 0x1000, scoped, tag = 'output window, operand 0, single buffered']
    %7 = vsyncpa [#allocation3], 0
    %8 = vsyncpa [#allocation6], 0
    %9 = vsyncpa [#allocation4], 0
    // Predicated region
    $region2: #{tpu_custom_call.1} parent=1 // pred_check
      _
    $region3: #{tpu_custom_call.1} parent=1 // pred_check_branch
      %11 = sbr.rel (0) target = $region5
    $region4: #{tpu_custom_call.1} parent=1 // pred_region
      %s12 = sadd.s32 0, 0
      %s13 = smul.u32 2, %s12
      %s15 = ssub.s32 256, 256
      %16 = vsyncadd [#allocation3], %s15
      %s17 = smul.addr %s13, 128
      %s18 = scalar_lea.hbm %s0, %s17
      %s19 = sshll.u32 [#allocation2], 4
      %s20 = int_to_ptr.vmem [resolvable:$true] %s19
      %25 = dma.hbm_to_vmem [thread:$0]  %s18, 256, %s20, [#allocation3], 128, 128, 8
    $region5: #{tpu_custom_call.1} parent=1 // pred_fallthru
      _
    // Predicated region
    $region6: #{tpu_custom_call.1} parent=1 // pred_check
      _
    $region7: #{tpu_custom_call.1} parent=1 // pred_check_branch
      %27 = sbr.rel (0) target = $region9
    $region8: #{tpu_custom_call.1} parent=1 // pred_region
      %s28 = sadd.s32 0, 0
      %s29 = smul.u32 2, %s28
      %s31 = ssub.s32 256, 256
      %32 = vsyncadd [#allocation6], %s31
      %s33 = smul.addr %s29, 128
      %s34 = scalar_lea.hbm %s1, %s33
      %s35 = sshll.u32 [#allocation5], 4
      %s36 = int_to_ptr.vmem [resolvable:$true] %s35
      %41 = dma.hbm_to_vmem [thread:$0]  %s34, 256, %s36, [#allocation6], 128, 128, 8
    $region9: #{tpu_custom_call.1} parent=1 // pred_fallthru
      _
    // Predicated region
    $region10: #{tpu_custom_call.1} parent=1 // pred_check
      _
    $region11: #{tpu_custom_call.1} parent=1 // pred_check_branch
      %43 = sbr.rel (0) target = $region13
    $region12: #{tpu_custom_call.1} parent=1 // pred_region
      %44 = dma.done [#allocation3], 256
    $region13: #{tpu_custom_call.1} parent=1 // pred_fallthru
      _
    // Predicated region
    $region14: #{tpu_custom_call.1} parent=1 // pred_check
      _
    $region15: #{tpu_custom_call.1} parent=1 // pred_check_branch
      %46 = sbr.rel (0) target = $region17
    $region16: #{tpu_custom_call.1} parent=1 // pred_region
      %47 = dma.done [#allocation6], 256
    $region17: #{tpu_custom_call.1} parent=1 // pred_fallthru
      _
    %s48 = sadd.s32 0, 0
    %s49 = smul.u32 2, %s48
    %s50 = sadd.s32 0, 0
    %s51 = smul.u32 2, %s50
    %p52 = scmp.eq.s32.totalorder 0, 0
    // Predicated region
    $region18: #{tpu_custom_call.1} parent=1 // pred_check
      %p53 = pneg %p52
    $region19: #{tpu_custom_call.1} parent=1 // pred_check_branch
      %55 = sbr.rel (%p53) target = $region21
    $region20: #{tpu_custom_call.1} parent=1 // pred_region
      %56 = vst [vmem:[#allocation7] sm:$0xff] 0.0
    $region21: #{tpu_custom_call.1} parent=1 // pred_fallthru
      _
    %v57 = vld [vmem:[#allocation7] sm:$0xff]
    %v58 = vld [vmem:[#allocation2] sm:$0xff]
    %v59 = vld [vmem:[#allocation2 + $0x8] sm:$0xff]
    %v60 = vld [vmem:[#allocation5] sm:$0xff]
    %v61 = vld [vmem:[#allocation5 + $0x8] sm:$0xff]
    %v62 = vand.u32 2147483647, %v58
    %v63 = vand.u32 2147483647, %v59
    %v64 = vsub.f32 0.0, %v62
    %v65 = vsub.f32 0.0, %v63
    %v66 = vmul.f32 %v64, 1.442695
    %v67 = vpow.pop %v66
    %v68 = vmul.f32 %v65, 1.442695
    %v69 = vpow.pop %v68
    %v70 = vadd.f32 %v67, 1.0
    %v71 = vadd.f32 %v69, 1.0
    %v72 = vmax.f32 %v58, 0.0
    %v73 = vmax.f32 %v59, 0.0
    %v74 = vmul.f32 %v58, %v60
    %v75 = vmul.f32 %v59, %v61
    %v76 = vsub.f32 %v72, %v74
    %v77 = vsub.f32 %v73, %v75
    %v78 = vlog2.pop %v70
    %v79 = vmul.f32 %v78, 0.6931472
    %v80 = vlog2.pop %v71
    %v81 = vmul.f32 %v80, 0.6931472
    %v82 = vadd.f32 %v76, %v79
    %v83 = vadd.f32 %v77, %v81
    %v84 = vrcp.pop %v70
    %v85 = vrcp.pop %v71
    %v86 = vmul.f32 %v70, %v84
    %v87 = vmul.f32 %v71, %v85
    %v88 = vsub.f32 2.0, %v86
    %v89 = vsub.f32 2.0, %v87
    %v90 = vmul.f32 %v84, %v88
    %v91 = vmul.f32 %v85, %v89
    %vm92 = vcmp.ge.f32.partialorder %v58, 0.0
    %vm93 = vcmp.ge.f32.partialorder %v59, 0.0
    %v94 = vmul.f32 %v67, %v90
    %v95 = vmul.f32 %v69, %v91
    %v96 = vsel %vm92, %v90, %v94
    %v97 = vsel %vm93, %v91, %v95
    %v98 = vsub.f32 %v96, %v60
    %v99 = vsub.f32 %v97, %v61
    %v100 = vsub.f32 %v98, 1.0
    %v101 = vsub.f32 %v99, 1.0
    %v102 = vmul.f32 %v100, 19.96008
    %v103 = vmul.f32 %v101, 19.96008
    %v104 = vmul.f32 %v102, 1.442695
    %v105 = vpow.pop %v104
    %v106 = vmul.f32 %v103, 1.442695
    %v107 = vpow.pop %v106
    %v108 = vsub.f32 1.0, %v105
    %v109 = vsub.f32 1.0, %v107
    %v110 = vmul.f32 %v82, %v108
    %v111 = vmul.f32 %v83, %v109
    %v112 = vadd.f32 %v110, %v111
    %v113 = vadd.f32 %v112, 0.0
    %v114 = vadd.f32 %v57, %v113
    %115 = vst [vmem:[#allocation7] sm:$0xff] %v114
    // Predicated region
    $region22: #{tpu_custom_call.1} parent=1 // pred_check
      _
    $region23: #{tpu_custom_call.1} parent=1 // pred_check_branch
      %117 = sbr.rel (0) target = $region25
    $region24: #{tpu_custom_call.1} parent=1 // pred_region
      %s119 = ssub.s32 128, 128
      %120 = vsyncadd [#allocation4], %s119
      %s122 = sshll.u32 [#allocation7], 4
      %s123 = int_to_ptr.vmem [resolvable:$true] %s122
      %125 = dma.vmem_to_hbm [thread:$0]  %s123, 128, %s2, [#allocation4]
    $region25: #{tpu_custom_call.1} parent=1 // pred_fallthru
      _
    // Predicated region
    $region26: #{tpu_custom_call.1} parent=1 // pred_check
      _
    $region27: #{tpu_custom_call.1} parent=1 // pred_check_branch
      %127 = sbr.rel (0) target = $region29
    $region28: #{tpu_custom_call.1} parent=1 // pred_region
      %128 = dma.done [#allocation4], 128
    $region29: #{tpu_custom_call.1} parent=1 // pred_fallthru
      _
    %129 = vsyncpa [#allocation3], 1
    %130 = vsyncpa [#allocation6], 1
    %131 = vsyncpa [#allocation4], 1

</llo_original>
